<compile_context>
chip_gen: v5e
topology: v5e:2x2
jax: 0.10.0
libtpu: 0.0.40
codegen_flags: <defaults>
</compile_context>

<pallas_src>
import math

import jax
import jax.numpy as jnp
from jax import lax
from jax.experimental import pallas as pl
from jax.experimental.pallas import tpu as pltpu


def ext_attn_kernel(x_ref, wa_ref, ba_ref, wz_ref, sh_ref, o_ref):
    # x_ref : (Bt, C, N)  input block (also the residual)
    # wa_ref: (K, C)   Wa = W0 @ W1         ba_ref: (K, 1)  ba = W0 @ b1
    # wz_ref: (C, K)   Wz = diag(bn_scale) @ Wc @ Wv
    # sh_ref: (C, 1)   folded BatchNorm shift
    # o_ref : (Bt, C, N)

    # Constant weights: load once, hoisted out of the batch-block loop.
    wa = wa_ref[...]
    ba = ba_ref[...]
    wz = wz_ref[...]
    sh = sh_ref[...]

    bt = x_ref.shape[0]

    def body(bb, carry):
        x = x_ref[bb]                                                  # (C, N)

        # Folded conv1 + linear_0:  attn = Wa @ x + ba                 -> (K, N)
        attn = jnp.dot(wa, x, preferred_element_type=jnp.float32) + ba

        # Softmax over the spatial axis (lanes), f32 math.
        m = jnp.max(attn, axis=-1, keepdims=True)
        e = jnp.exp(attn - m)
        attn = e * pl.reciprocal(jnp.sum(e, axis=-1, keepdims=True), approx=True)

        # Renormalize over K (torch dim=1) with the 1e-9 guard.
        # Exact division here so reciprocal approximation errors don't compound.
        attn = attn / (jnp.sum(attn, axis=0, keepdims=True) + 1e-9)

        # Folded linear_1 + conv2 + BatchNorm:  z = Wz @ attn + shift  -> (C, N)
        z = jnp.dot(wz, attn.astype(wz.dtype),
                    preferred_element_type=jnp.float32) + sh

        # Residual + ReLU.
        o_ref[bb] = jnp.maximum(z + x.astype(jnp.float32), 0.0).astype(o_ref.dtype)
        return carry

    # fori_loop bounds live ranges as Bt grows; unroll short trip counts so the
    # LLO scheduler can interleave the independent MXU pushes across bb iterations.
    lax.fori_loop(0, bt, body, 0, unroll=(bt <= 4))


def _vmem_capacity_bytes():
    try:
        return int(pltpu.get_tpu_info().vmem_capacity_bytes)
    except Exception:
        return 64 * 1024 * 1024   # v7x per-TensorCore (the most restrictive generation)


def _block_bytes(bt, C, K, N, act_itemsize):
    io = 2 * 2 * bt * C * N * act_itemsize        # double-buffered x + out blocks
    weights = (K * C + K + C * K + C) * 4         # composed f32 weights, single-buffered
    interm = (K * N + 2 * C * N) * 4              # per-bb f32 intermediates
    return io, weights, interm


def _choose_batch_block(B, C, K, N, act_itemsize, budget):
    best = 1
    for bt in range(1, B + 1):
        if B % bt:
            continue
        if B > 1 and B // bt < 2:
            continue   # keep >= 2 grid steps so v7x's second TensorCore gets work
        io, w, i = _block_bytes(bt, C, K, N, act_itemsize)
        if io + w + i <= budget:
            best = bt
    return best


def external_attention(x, w1, b1, w0, wv, wc,
                       bn_gamma, bn_beta, bn_mean, bn_var,
                       *, bn_eps=1e-5, batch_block=None):
    """x: (B, C, H, W). Weights follow the PyTorch storage conventions:
       w1,wc: (C, C); b1: (C,); w0: (K, C); wv: (C, K); BN params: (C,)."""
    B, C, H, W = x.shape
    N = H * W
    K = w0.shape[0]

    act_dtype = x.dtype
    act_itemsize = jnp.dtype(act_dtype).itemsize
    x3 = x.reshape(B, C, N)

    # ---- Algebraic folding of the 1x1-conv chain (composed in f32, before any cast). ----
    f32 = jnp.float32
    w1f, b1f, w0f, wvf, wcf = (a.astype(f32) for a in (w1, b1, w0, wv, wc))
    inv_std = 1.0 / jnp.sqrt(bn_var.astype(f32) + bn_eps)
    scale = bn_gamma.astype(f32) * inv_std                                    # (C,)
    wa = (w0f @ w1f).astype(act_dtype)                                        # (K, C)
    ba = (w0f @ b1f.reshape(C, 1)).astype(f32)                                # (K, 1)
    wz = (scale[:, None] * (wcf @ wvf)).astype(act_dtype)                     # (C, K)
    shift = (bn_beta.astype(f32) - bn_mean.astype(f32) * scale).reshape(C, 1)  # (C, 1)

    # ---- Generation-aware VMEM budgeting for the batch block. ----
    capacity = _vmem_capacity_bytes()
    if batch_block is None:
        batch_block = _choose_batch_block(B, C, K, N, act_itemsize, capacity // 2)
    assert B % batch_block == 0
    Bt = batch_block
    io_b, w_b, i_b = _block_bytes(Bt, C, K, N, act_itemsize)
    vmem_limit = int(min(capacity - 4 * 1024 * 1024,
                         max(io_b + w_b + i_b + 4 * 1024 * 1024, 16 * 1024 * 1024)))

    # Advisory cost estimate for the XLA scheduler.
    flops = B * (4 * K * C * N + 6 * K * N + 4 * C * N)
    cost = pl.CostEstimate(
        flops=flops,
        transcendentals=B * K * N,
        bytes_accessed=2 * B * C * N * act_itemsize + w_b,
    )

    weight_mode = pl.Buffered(1)   # constant-index inputs: single-buffer, save VMEM

    out = pl.pallas_call(
        ext_attn_kernel,
        out_shape=jax.ShapeDtypeStruct((B, C, N), act_dtype),
        grid_spec=pltpu.PrefetchScalarGridSpec(
            num_scalar_prefetch=0,
            grid=(B // Bt,),
            in_specs=[
                pl.BlockSpec((Bt, C, N), lambda b: (b, 0, 0)),                      # x
                pl.BlockSpec((K, C), lambda b: (0, 0), pipeline_mode=weight_mode),  # Wa
                pl.BlockSpec((K, 1), lambda b: (0, 0), pipeline_mode=weight_mode),  # ba
                pl.BlockSpec((C, K), lambda b: (0, 0), pipeline_mode=weight_mode),  # Wz
                pl.BlockSpec((C, 1), lambda b: (0, 0), pipeline_mode=weight_mode),  # shift
            ],
            out_specs=pl.BlockSpec((Bt, C, N), lambda b: (b, 0, 0)),
        ),
        compiler_params=pltpu.CompilerParams(
            dimension_semantics=("parallel",),
            vmem_limit_bytes=vmem_limit,
        ),
        cost_estimate=cost,
    )(x3, wa, ba, wz, shift)

    return out.reshape(B, C, H, W)


def reference_external_attention(x, w1, b1, w0, wv, wc,
                                 bn_gamma, bn_beta, bn_mean, bn_var, bn_eps=1e-5):
    """Pure-JAX reference mirroring the PyTorch forward (BN in inference mode),
    deliberately UNFUSED to validate the algebraic weight folding."""
    B, C, H, W = x.shape
    N = H * W
    xv = x.reshape(B, C, N)
    y = jnp.einsum("ij,bjn->bin", w1, xv) + b1[None, :, None]
    attn = jnp.einsum("kj,bjn->bkn", w0, y)
    attn = jax.nn.softmax(attn, axis=-1)
    attn = attn / (1e-9 + attn.sum(axis=1, keepdims=True))
    z = jnp.einsum("ck,bkn->bcn", wv, attn)
    z = jnp.einsum("ij,bjn->bin", wc, z)
    scale = bn_gamma / jnp.sqrt(bn_var + bn_eps)
    z = z * scale[None, :, None] + (bn_beta - bn_mean * scale)[None, :, None]
    out = jnp.maximum(z + xv, 0.0)
    return out.reshape(B, C, H, W)


if __name__ == "__main__":
    # Shapes consistent with the module: c=64 channels -> k=min(64, c//2)=32,
    # 16x16 spatial (N = 256, multiple of 128 -> lane-dense output), batch 2.
    B, C, H, W = 2, 64, 16, 16
    K = min(64, C // 2)

    key = jax.random.PRNGKey(0)
    ks = jax.random.split(key, 6)

    x = jax.random.normal(ks[0], (B, C, H, W), dtype=jnp.float32)
    # Module init: Conv weights ~ N(0, sqrt(2/n)), n = kernel_area * out_channels.
    w1 = math.sqrt(2.0 / C) * jax.random.normal(ks[1], (C, C), dtype=jnp.float32)
    b1 = 0.1 * jax.random.normal(ks[2], (C,), dtype=jnp.float32)
    w0 = math.sqrt(2.0 / K) * jax.random.normal(ks[3], (K, C), dtype=jnp.float32)
    wv = math.sqrt(2.0 / C) * jax.random.normal(ks[4], (C, K), dtype=jnp.float32)
    wc = math.sqrt(2.0 / C) * jax.random.normal(ks[5], (C, C), dtype=jnp.float32)
    # BatchNorm init per the module: weight=1, bias=0; default running stats.
    bn_gamma = jnp.ones((C,), dtype=jnp.float32)
    bn_beta = jnp.zeros((C,), dtype=jnp.float32)
    bn_mean = jnp.zeros((C,), dtype=jnp.float32)
    bn_var = jnp.ones((C,), dtype=jnp.float32)

    out = external_attention(x, w1, b1, w0, wv, wc,
                             bn_gamma, bn_beta, bn_mean, bn_var)
    out = jax.block_until_ready(out)

    ref = reference_external_attention(x, w1, b1, w0, wv, wc,
                                       bn_gamma, bn_beta, bn_mean, bn_var)
    assert out.shape == (B, C, H, W)
    # Tolerance covers pl.reciprocal(approx=True) on the softmax denom (~2^-12 rel).
    assert jnp.allclose(out, ref, atol=2e-3, rtol=2e-3), "mismatch vs reference"

    print("KERNEL_OK")
</pallas_src>

<mosaic_0001>
module attributes {stable_mosaic.version = 11 : i64} {
  func.func @ext_attn_kernel(%arg0: i32, %arg1: memref<1x64x256xf32, #tpu.memory_space<vmem>>, %arg2: memref<32x64xf32, #tpu.memory_space<vmem>>, %arg3: memref<32x1xf32, #tpu.memory_space<vmem>>, %arg4: memref<64x32xf32, #tpu.memory_space<vmem>>, %arg5: memref<64x1xf32, #tpu.memory_space<vmem>>, %arg6: memref<1x64x256xf32, #tpu.memory_space<vmem>>) attributes {dimension_semantics = [#tpu.dimension_semantics<parallel>], iteration_bounds = array<i64: 2>, scalar_prefetch = 0 : i64, scratch_operands = 0 : i64, tpu.core_type = #tpu.core_type<tc>, window_params = [{transform_indices = @transform_0, window_bounds = array<i64: 1, 64, 256>}, {pipeline_mode = #tpu.pipeline_mode<synchronous>, transform_indices = @transform_1, window_bounds = array<i64: 32, 64>}, {pipeline_mode = #tpu.pipeline_mode<synchronous>, transform_indices = @transform_2, window_bounds = array<i64: 32, 1>}, {pipeline_mode = #tpu.pipeline_mode<synchronous>, transform_indices = @transform_3, window_bounds = array<i64: 64, 32>}, {pipeline_mode = #tpu.pipeline_mode<synchronous>, transform_indices = @transform_4, window_bounds = array<i64: 64, 1>}, {transform_indices = @transform_5, window_bounds = array<i64: 1, 64, 256>}]} {
    %c0 = arith.constant 0 : index
    %c0_0 = arith.constant 0 : index
    %0 = vector.load %arg2[%c0, %c0_0] : memref<32x64xf32, #tpu.memory_space<vmem>>, vector<32x64xf32>
    %c0_1 = arith.constant 0 : index
    %c0_2 = arith.constant 0 : index
    %1 = vector.load %arg3[%c0_1, %c0_2] : memref<32x1xf32, #tpu.memory_space<vmem>>, vector<32x1xf32>
    %c0_3 = arith.constant 0 : index
    %c0_4 = arith.constant 0 : index
    %2 = vector.load %arg4[%c0_3, %c0_4] : memref<64x32xf32, #tpu.memory_space<vmem>>, vector<64x32xf32>
    %c0_5 = arith.constant 0 : index
    %c0_6 = arith.constant 0 : index
    %3 = vector.load %arg5[%c0_5, %c0_6] : memref<64x1xf32, #tpu.memory_space<vmem>>, vector<64x1xf32>
    %c0_i32 = arith.constant 0 : i32
    %4 = arith.index_cast %c0_i32 : i32 to index
    %c0_7 = arith.constant 0 : index
    %c0_8 = arith.constant 0 : index
    %5 = vector.load %arg1[%4, %c0_7, %c0_8] : memref<1x64x256xf32, #tpu.memory_space<vmem>>, vector<1x64x256xf32>
    %6 = vector.shape_cast %5 : vector<1x64x256xf32> to vector<64x256xf32>
    %cst = arith.constant dense<0.000000e+00> : vector<32x256xf32>
    %7 = tpu.matmul %0, %6, %cst {dimension_numbers = #tpu.dot_dimension_numbers<[1], [0], [0], [1], [0, 0, 1, 1], [], []>} : vector<32x64xf32>, vector<64x256xf32>, vector<32x256xf32> -> vector<32x256xf32>
    %8 = vector.broadcast %1 : vector<32x1xf32> to vector<32x256xf32>
    %9 = arith.addf %7, %8 : vector<32x256xf32>
    %cst_9 = arith.constant dense<0xFF800000> : vector<32xf32>
    %10 = vector.multi_reduction <maximumf>, %9, %cst_9 [1] : vector<32x256xf32> to vector<32xf32>
    %11 = vector.shape_cast %10 : vector<32xf32> to vector<32x1xf32>
    %12 = vector.broadcast %11 : vector<32x1xf32> to vector<32x256xf32>
    %13 = arith.subf %9, %12 : vector<32x256xf32>
    %14 = math.exp %13 : vector<32x256xf32>
    %cst_10 = arith.constant dense<0.000000e+00> : vector<32xf32>
    %15 = vector.multi_reduction <add>, %14, %cst_10 [1] : vector<32x256xf32> to vector<32xf32>
    %16 = vector.shape_cast %15 : vector<32xf32> to vector<32x1xf32>
    %17 = tpu.reciprocal %16 {approx = true} : vector<32x1xf32> -> vector<32x1xf32>
    %18 = vector.broadcast %17 : vector<32x1xf32> to vector<32x256xf32>
    %19 = arith.mulf %14, %18 : vector<32x256xf32>
    %cst_11 = arith.constant dense<0.000000e+00> : vector<256xf32>
    %20 = vector.multi_reduction <add>, %19, %cst_11 [0] : vector<32x256xf32> to vector<256xf32>
    %21 = vector.shape_cast %20 : vector<256xf32> to vector<1x256xf32>
    %cst_12 = arith.constant 9.99999971E-10 : f32
    %22 = vector.broadcast %cst_12 : f32 to vector<1x256xf32>
    %23 = arith.addf %21, %22 : vector<1x256xf32>
    %24 = vector.broadcast %23 : vector<1x256xf32> to vector<32x256xf32>
    %25 = arith.divf %19, %24 : vector<32x256xf32>
    %cst_13 = arith.constant dense<0.000000e+00> : vector<64x256xf32>
    %26 = tpu.matmul %2, %25, %cst_13 {dimension_numbers = #tpu.dot_dimension_numbers<[1], [0], [0], [1], [0, 0, 1, 1], [], []>} : vector<64x32xf32>, vector<32x256xf32>, vector<64x256xf32> -> vector<64x256xf32>
    %27 = vector.broadcast %3 : vector<64x1xf32> to vector<64x256xf32>
    %28 = arith.addf %26, %27 : vector<64x256xf32>
    %29 = arith.addf %28, %6 : vector<64x256xf32>
    %cst_14 = arith.constant 0.000000e+00 : f32
    %30 = vector.broadcast %cst_14 : f32 to vector<64x256xf32>
    %31 = arith.maximumf %29, %30 : vector<64x256xf32>
    %32 = arith.index_cast %c0_i32 : i32 to index
    %c0_15 = arith.constant 0 : index
    %c0_16 = arith.constant 0 : index
    %33 = vector.load %arg6[%32, %c0_15, %c0_16] : memref<1x64x256xf32, #tpu.memory_space<vmem>>, vector<1x64x256xf32>
    %34 = vector.shape_cast %33 : vector<1x64x256xf32> to vector<64x256xf32>
    %35 = vector.shape_cast %31 : vector<64x256xf32> to vector<1x64x256xf32>
    tpu.vector_store %arg6[%32, %c0_15, %c0_16], %35 {strides = array<i32>} : memref<1x64x256xf32, #tpu.memory_space<vmem>>, vector<1x64x256xf32>,
    %c1_i32 = arith.constant 1 : i32
    return
  }
  func.func @transform_0(%arg0: i32) -> (i32, i32, i32) {
    %c0_i32 = arith.constant 0 : i32
    %c0_i32_0 = arith.constant 0 : i32
    %c0_i32_1 = arith.constant 0 : i32
    return %arg0, %c0_i32, %c0_i32_0 : i32, i32, i32
  }
  func.func @transform_1(%arg0: i32) -> (i32, i32) {
    %c0_i32 = arith.constant 0 : i32
    %c0_i32_0 = arith.constant 0 : i32
    %c0_i32_1 = arith.constant 0 : i32
    return %c0_i32, %c0_i32_0 : i32, i32
  }
  func.func @transform_2(%arg0: i32) -> (i32, i32) {
    %c0_i32 = arith.constant 0 : i32
    %c0_i32_0 = arith.constant 0 : i32
    %c0_i32_1 = arith.constant 0 : i32
    return %c0_i32, %c0_i32_0 : i32, i32
  }
  func.func @transform_3(%arg0: i32) -> (i32, i32) {
    %c0_i32 = arith.constant 0 : i32
    %c0_i32_0 = arith.constant 0 : i32
    %c0_i32_1 = arith.constant 0 : i32
    return %c0_i32, %c0_i32_0 : i32, i32
  }
  func.func @transform_4(%arg0: i32) -> (i32, i32) {
    %c0_i32 = arith.constant 0 : i32
    %c0_i32_0 = arith.constant 0 : i32
    %c0_i32_1 = arith.constant 0 : i32
    return %c0_i32, %c0_i32_0 : i32, i32
  }
  func.func @transform_5(%arg0: i32) -> (i32, i32, i32) {
    %c0_i32 = arith.constant 0 : i32
    %c0_i32_0 = arith.constant 0 : i32
    %c0_i32_1 = arith.constant 0 : i32
    return %arg0, %c0_i32, %c0_i32_0 : i32, i32, i32
  }
}

</mosaic_0001>

<llo_original>
// kernel: tpu_custom_call.1
$region0: #{tpu_custom_call.1}
  #allocation0 [shape = 'u32[]', space=smem, size = 0x4, offset = 0x4, fixed_abs, tag = 'smem constant byte address 0x4 - core index']
  #allocation1 [shape = 'u32[72,128]{1,0:T(1,128)}', space=vmem, size = 0x9000, scoped, tag = 'internal scratch']
  %s0 = inlined_call_operand.hbm [shape: f32[2,64,256], index: 0, kind: input, shape index: {}]
  %s1 = inlined_call_operand.vmem [shape: f32[32,64], index: 1, kind: input, shape index: {}]
  %s2 = inlined_call_operand.vmem [shape: f32[32,1], index: 2, kind: input, shape index: {}]
  %s3 = inlined_call_operand.vmem [shape: f32[64,32], index: 3, kind: input, shape index: {}]
  %s4 = inlined_call_operand.vmem [shape: f32[64,1], index: 4, kind: input, shape index: {}]
  %s5 = inlined_call_operand.hbm [shape: f32[2,64,256], index: 5, kind: output, shape index: {}]
  %s6 = sld [smem:[#allocation0]]
  $region57: #{tpu_custom_call.1} parent=0
    _
  %s8 = ssub.s32 1, %s6
  %s9 = scalar_select 0, %s8, %s6
  $region1: #{tpu_custom_call.1} parent=0
    #allocation2 [shape = 'u8[131072]{0}', space=vmem, size = 0x20000, scoped, tag = 'input window, operand 0']
    #allocation3 [shape = 's32[2]{0}', space=sflag, size = 0x8, scoped, tag = 'scoped memory for tpu_custom_call.1']
    #allocation4 [shape = 's32[2]{0}', space=sflag, size = 0x8, scoped, tag = 'scoped memory for tpu_custom_call.1']
    #allocation5 [shape = 'u8[131072]{0}', space=vmem, size = 0x20000, scoped, tag = 'output window, operand 0']
    %10 = vsyncpa [#allocation3], 0
    %s11 = scalar_lea.sflag [#allocation3], 1
    %12 = vsyncpa %s11, 0
    %13 = vsyncpa [#allocation4], 0
    %s14 = scalar_lea.sflag [#allocation4], 1
    %15 = vsyncpa %s14, 0
    loop: start=0, step=1, limit=4
    $region2: #{tpu_custom_call.1} parent=1 // loop_pre_header
      _
    $region3: #{tpu_custom_call.1} parent=1 // loop_header
      %s17 = sphi 0, %s21
      %p18 = scmp.ge.s32.totalorder %s17, 4
      %s27 = sphi 0, %s29
      %s30 = sphi 0, %s27
      %s31 = sphi 0, %s30
      %s47 = sphi 0, %s31
      %s51 = sphi 0, %s51
      %s53 = sphi 0, %s51
      %s54 = sphi 0, %s53
      %s68 = sphi 0, %s54
      %s72 = sphi 0, %s72
      %s74 = sphi 0, %s72
      %s75 = sphi 0, %s74
      %s89 = sphi 0, %s75
      %s93 = sphi 0, %s93
      %s95 = sphi 0, %s93
      %s96 = sphi 0, %s95
      %s110 = sphi 0, %s96
      %s114 = sphi 0, %s114
      %s116 = sphi 0, %s114
      %s117 = sphi 0, %s116
      %s131 = sphi 0, %s117
      %s137 = sphi 0, %s139
      %s140 = sphi 0, %s137
      %s141 = sphi 0, %s140
      %s157 = sphi 0, %s141
    $region4: #{tpu_custom_call.1} parent=1 // loop_header_branch
      %20 = sbr.rel (%p18) target = $region8
    $region5: #{tpu_custom_call.1} parent=1 // loop_body
      %s22 = ssub.s32 %s17, 1
      %s23 = ssub.s32 %s17, 2
      %s24 = sadd.s32 %s17, 1
      %s25 = ssub.s32 %s17, %s24
      %p26 = scmp.eq.s32.totalorder %s25, 0
      %s28 = sadd.s32 %s27, 1
      %s29 = scalar_select %p26, %s27, %s28
      %p32 = pneg %p26
      %p33 = scmp.eq.s32.totalorder %s17, 1
      %p34 = por %p32, %p33
      %p35 = scmp.ne.s32.totalorder %s27, %s30
      %p36 = scmp.eq.s32.totalorder %s17, 0
      %p37 = por %p35, %p36
      %p38 = scmp.ne.s32.totalorder %s27, %s30
      %p39 = scmp.eq.s32.totalorder %s22, 1
      %p40 = por %p38, %p39
      %p41 = scmp.ne.s32.totalorder %s30, %s31
      %p42 = scmp.eq.s32.totalorder %s22, 0
      %p43 = por %p41, %p42
      %p44 = scmp.ne.s32.totalorder %s30, %s31
      %p45 = scmp.eq.s32.totalorder %s23, 1
      %p46 = por %p44, %p45
      %p48 = scmp.ne.s32.totalorder %s31, %s47
      %p49 = scmp.eq.s32.totalorder %s23, 0
      %p50 = por %p48, %p49
      %s52 = sadd.s32 %s51, 1
      %p55 = scmp.eq.s32.totalorder %s17, 1
      %p56 = scmp.ne.s32.totalorder %s51, %s53
      %p57 = scmp.eq.s32.totalorder %s17, 0
      %p58 = por %p56, %p57
      %p59 = scmp.ne.s32.totalorder %s51, %s53
      %p60 = scmp.eq.s32.totalorder %s22, 1
      %p61 = por %p59, %p60
      %p62 = scmp.ne.s32.totalorder %s53, %s54
      %p63 = scmp.eq.s32.totalorder %s22, 0
      %p64 = por %p62, %p63
      %p65 = scmp.ne.s32.totalorder %s53, %s54
      %p66 = scmp.eq.s32.totalorder %s23, 1
      %p67 = por %p65, %p66
      %p69 = scmp.ne.s32.totalorder %s54, %s68
      %p70 = scmp.eq.s32.totalorder %s23, 0
      %p71 = por %p69, %p70
      %s73 = sadd.s32 %s72, 1
      %p76 = scmp.eq.s32.totalorder %s17, 1
      %p77 = scmp.ne.s32.totalorder %s72, %s74
      %p78 = scmp.eq.s32.totalorder %s17, 0
      %p79 = por %p77, %p78
      %p80 = scmp.ne.s32.totalorder %s72, %s74
      %p81 = scmp.eq.s32.totalorder %s22, 1
      %p82 = por %p80, %p81
      %p83 = scmp.ne.s32.totalorder %s74, %s75
      %p84 = scmp.eq.s32.totalorder %s22, 0
      %p85 = por %p83, %p84
      %p86 = scmp.ne.s32.totalorder %s74, %s75
      %p87 = scmp.eq.s32.totalorder %s23, 1
      %p88 = por %p86, %p87
      %p90 = scmp.ne.s32.totalorder %s75, %s89
      %p91 = scmp.eq.s32.totalorder %s23, 0
      %p92 = por %p90, %p91
      %s94 = sadd.s32 %s93, 1
      %p97 = scmp.eq.s32.totalorder %s17, 1
      %p98 = scmp.ne.s32.totalorder %s93, %s95
      %p99 = scmp.eq.s32.totalorder %s17, 0
      %p100 = por %p98, %p99
      %p101 = scmp.ne.s32.totalorder %s93, %s95
      %p102 = scmp.eq.s32.totalorder %s22, 1
      %p103 = por %p101, %p102
      %p104 = scmp.ne.s32.totalorder %s95, %s96
      %p105 = scmp.eq.s32.totalorder %s22, 0
      %p106 = por %p104, %p105
      %p107 = scmp.ne.s32.totalorder %s95, %s96
      %p108 = scmp.eq.s32.totalorder %s23, 1
      %p109 = por %p107, %p108
      %p111 = scmp.ne.s32.totalorder %s96, %s110
      %p112 = scmp.eq.s32.totalorder %s23, 0
      %p113 = por %p111, %p112
      %s115 = sadd.s32 %s114, 1
      %p118 = scmp.eq.s32.totalorder %s17, 1
      %p119 = scmp.ne.s32.totalorder %s114, %s116
      %p120 = scmp.eq.s32.totalorder %s17, 0
      %p121 = por %p119, %p120
      %p122 = scmp.ne.s32.totalorder %s114, %s116
      %p123 = scmp.eq.s32.totalorder %s22, 1
      %p124 = por %p122, %p123
      %p125 = scmp.ne.s32.totalorder %s116, %s117
      %p126 = scmp.eq.s32.totalorder %s22, 0
      %p127 = por %p125, %p126
      %p128 = scmp.ne.s32.totalorder %s116, %s117
      %p129 = scmp.eq.s32.totalorder %s23, 1
      %p130 = por %p128, %p129
      %p132 = scmp.ne.s32.totalorder %s117, %s131
      %p133 = scmp.eq.s32.totalorder %s23, 0
      %p134 = por %p132, %p133
      %s135 = ssub.s32 %s17, %s24
      %p136 = scmp.eq.s32.totalorder %s135, 0
      %s138 = sadd.s32 %s137, 1
      %s139 = scalar_select %p136, %s137, %s138
      %p142 = pneg %p136
      %p143 = scmp.eq.s32.totalorder %s17, 1
      %p144 = por %p142, %p143
      %p145 = scmp.ne.s32.totalorder %s137, %s140
      %p146 = scmp.eq.s32.totalorder %s17, 0
      %p147 = por %p145, %p146
      %p148 = scmp.ne.s32.totalorder %s137, %s140
      %p149 = scmp.eq.s32.totalorder %s22, 1
      %p150 = por %p148, %p149
      %p151 = scmp.ne.s32.totalorder %s140, %s141
      %p152 = scmp.eq.s32.totalorder %s22, 0
      %p153 = por %p151, %p152
      %p154 = scmp.ne.s32.totalorder %s140, %s141
      %p155 = scmp.eq.s32.totalorder %s23, 1
      %p156 = por %p154, %p155
      %p158 = scmp.ne.s32.totalorder %s141, %s157
      %p159 = scmp.eq.s32.totalorder %s23, 0
      %p160 = por %p158, %p159
      %p161 = scmp.le.s32.totalorder 1, %s17
      %p162 = scmp.lt.s32.totalorder %s17, 3
      %p163 = pnand %p161, %p162
      %p164 = pneg %p163
      // Predicated region
      $region9: #{tpu_custom_call.1} parent=5 // pred_check
        _
      $region10: #{tpu_custom_call.1} parent=5 // pred_check_branch
        %166 = sbr.rel (%p163) target = $region12
      $region11: #{tpu_custom_call.1} parent=5 // pred_region
        %s167 = ssub.s32 %s17, 1
        // Predicated region
        $region13: #{tpu_custom_call.1} parent=11 // pred_check
          %p168 = pneg %p64
        $region14: #{tpu_custom_call.1} parent=11 // pred_check_branch
          %170 = sbr.rel (%p168) target = $region16
        $region15: #{tpu_custom_call.1} parent=11 // pred_region
          _
        $region16: #{tpu_custom_call.1} parent=11 // pred_fallthru
          _
        // Predicated region
        $region17: #{tpu_custom_call.1} parent=11 // pred_check
          %p171 = pneg %p85
        $region18: #{tpu_custom_call.1} parent=11 // pred_check_branch
          %173 = sbr.rel (%p171) target = $region20
        $region19: #{tpu_custom_call.1} parent=11 // pred_region
          _
        $region20: #{tpu_custom_call.1} parent=11 // pred_fallthru
          _
        // Predicated region
        $region21: #{tpu_custom_call.1} parent=11 // pred_check
          %p174 = pneg %p106
        $region22: #{tpu_custom_call.1} parent=11 // pred_check_branch
          %176 = sbr.rel (%p174) target = $region24
        $region23: #{tpu_custom_call.1} parent=11 // pred_region
          _
        $region24: #{tpu_custom_call.1} parent=11 // pred_fallthru
          _
        // Predicated region
        $region25: #{tpu_custom_call.1} parent=11 // pred_check
          %p177 = pneg %p127
        $region26: #{tpu_custom_call.1} parent=11 // pred_check_branch
          %179 = sbr.rel (%p177) target = $region28
        $region27: #{tpu_custom_call.1} parent=11 // pred_region
          _
        $region28: #{tpu_custom_call.1} parent=11 // pred_fallthru
          _
      $region12: #{tpu_custom_call.1} parent=5 // pred_fallthru
        _
      %p180 = scmp.lt.s32.totalorder %s17, 2
      // Predicated region
      $region29: #{tpu_custom_call.1} parent=5 // pred_check
        %p181 = pneg %p180
      $region30: #{tpu_custom_call.1} parent=5 // pred_check_branch
        %183 = sbr.rel (%p181) target = $region32
      $region31: #{tpu_custom_call.1} parent=5 // pred_region
        // Predicated region
        $region33: #{tpu_custom_call.1} parent=31 // pred_check
          %p184 = pneg %p37
        $region34: #{tpu_custom_call.1} parent=31 // pred_check_branch
          %186 = sbr.rel (%p184) target = $region36
        $region35: #{tpu_custom_call.1} parent=31 // pred_region
          %s187 = sand.u32 %s27, 1
          %s188 = scalar_lea.sflag [#allocation3], %s187
          %s189 = sand.u32 %s27, 1
          %s190 = smul.addr %s189, 128
          %s191 = scalar_lea.vmem [#allocation2], %s190
          %193 = vsyncadd %s188, 0
          %s194 = smul.addr %s17, 16
          %s195 = smul.addr %s194, 8
          %s196 = scalar_lea.hbm %s0, %s195
          %s197 = sshll.u32 %s196, 4
          %s198 = int_to_ptr.hbm [resolvable:$true] %s197
          %s199 = sshll.u32 %s191, 4
          %s200 = int_to_ptr.vmem [resolvable:$true] %s199
          %205 = dma.hbm_to_vmem [thread:$0]  %s198, 2048, %s200, %s188, 256, 256, 16
        $region36: #{tpu_custom_call.1} parent=31 // pred_fallthru
          _
      $region32: #{tpu_custom_call.1} parent=5 // pred_fallthru
        _
      %p206 = scmp.le.s32.totalorder 1, %s17
      %p207 = scmp.lt.s32.totalorder %s17, 3
      %p208 = pnand %p206, %p207
      %p209 = pneg %p208
      // Predicated region
      $region37: #{tpu_custom_call.1} parent=5 // pred_check
        _
      $region38: #{tpu_custom_call.1} parent=5 // pred_check_branch
        %211 = sbr.rel (%p208) target = $region40
      $region39: #{tpu_custom_call.1} parent=5 // pred_region
        %s212 = ssub.s32 %s17, 1
        %s213 = sand.u32 %s30, 1
        %s214 = scalar_lea.sflag [#allocation3], %s213
        %s215 = sand.u32 %s30, 1
        %s216 = smul.addr %s215, 128
        %s217 = scalar_lea.vmem [#allocation2], %s216
        // Predicated region
        $region41: #{tpu_custom_call.1} parent=39 // pred_check
          %p218 = pneg %p43
        $region42: #{tpu_custom_call.1} parent=39 // pred_check_branch
          %220 = sbr.rel (%p218) target = $region44
        $region43: #{tpu_custom_call.1} parent=39 // pred_region
          %222 = dma.done %s214, 2048
        $region44: #{tpu_custom_call.1} parent=39 // pred_fallthru
          _
        %s223 = sand.u32 %s30, 1
        %s224 = scalar_lea.sflag [#allocation3], %s223
        %s225 = sand.u32 %s30, 1
        %s226 = smul.addr %s225, 128
        %s227 = scalar_lea.vmem [#allocation2], %s226
        %p228 = pneg %p43
        %p229 = pneg %p40
        %p230 = pneg %p64
        %p231 = pneg %p61
        %p232 = pneg %p85
        %p233 = pneg %p82
        %p234 = pneg %p106
        %p235 = pneg %p103
        %p236 = pneg %p127
        %p237 = pneg %p124
        %p238 = pneg %p153
        %p239 = pneg %p150
        %s240 = sand.u32 %s140, 1
        %s241 = scalar_lea.sflag [#allocation4], %s240
        %s242 = sand.u32 %s140, 1
        %s243 = smul.addr %s242, 128
        %s244 = scalar_lea.vmem [#allocation5], %s243
        %v245 = vld [vmem:[%s1] sm:$0xff]
        %v246 = vld [vmem:[%s1 + $0x8] sm:$0xff]
        %v247 = vld [vmem:[%s1 + $0x10] sm:$0xff]
        %v248 = vld [vmem:[%s1 + $0x18] sm:$0xff]
        %v249 = vld [vmem:[%s2] sm:$0xff]
        %v250 = vld [vmem:[%s2 + $0x8] sm:$0xff]
        %v251 = vld [vmem:[%s2 + $0x10] sm:$0xff]
        %v252 = vld [vmem:[%s2 + $0x18] sm:$0xff]
        %v253 = vld [vmem:[%s3] sm:$0xff]
        %v254 = vld [vmem:[%s3 + $0x8] sm:$0xff]
        %v255 = vld [vmem:[%s3 + $0x10] sm:$0xff]
        %v256 = vld [vmem:[%s3 + $0x18] sm:$0xff]
        %v257 = vld [vmem:[%s3 + $0x20] sm:$0xff]
        %v258 = vld [vmem:[%s3 + $0x28] sm:$0xff]
        %v259 = vld [vmem:[%s3 + $0x30] sm:$0xff]
        %v260 = vld [vmem:[%s3 + $0x38] sm:$0xff]
        %v261 = vld [vmem:[%s4] sm:$0xff]
        %v262 = vld [vmem:[%s4 + $0x8] sm:$0xff]
        %v263 = vld [vmem:[%s4 + $0x10] sm:$0xff]
        %v264 = vld [vmem:[%s4 + $0x18] sm:$0xff]
        %v265 = vld [vmem:[%s4 + $0x20] sm:$0xff]
        %v266 = vld [vmem:[%s4 + $0x28] sm:$0xff]
        %v267 = vld [vmem:[%s4 + $0x30] sm:$0xff]
        %v268 = vld [vmem:[%s4 + $0x38] sm:$0xff]
        %v269 = vld [vmem:[%s217] sm:$0xff]
        %v270 = vld [vmem:[%s217 + $0x8] sm:$0xff]
        %v271 = vld [vmem:[%s217 + $0x10] sm:$0xff]
        %v272 = vld [vmem:[%s217 + $0x18] sm:$0xff]
        %v273 = vld [vmem:[%s217 + $0x20] sm:$0xff]
        %v274 = vld [vmem:[%s217 + $0x28] sm:$0xff]
        %v275 = vld [vmem:[%s217 + $0x30] sm:$0xff]
        %v276 = vld [vmem:[%s217 + $0x38] sm:$0xff]
        %v277 = vld [vmem:[%s217 + $0x40] sm:$0xff]
        %v278 = vld [vmem:[%s217 + $0x48] sm:$0xff]
        %v279 = vld [vmem:[%s217 + $0x50] sm:$0xff]
        %v280 = vld [vmem:[%s217 + $0x58] sm:$0xff]
        %v281 = vld [vmem:[%s217 + $0x60] sm:$0xff]
        %v282 = vld [vmem:[%s217 + $0x68] sm:$0xff]
        %v283 = vld [vmem:[%s217 + $0x70] sm:$0xff]
        %v284 = vld [vmem:[%s217 + $0x78] sm:$0xff]
        %286 = vset.pattern.permute.xlu0 0
        %287 = vperm.xlu0 %286, %v249
        %v288 = vpop.permute.xlu0 %287
        %291 = vset.pattern.permute.xlu0 0
        %292 = vperm.xlu0 %291, %v250
        %v293 = vpop.permute.xlu0 %292
        %296 = vset.pattern.permute.xlu0 0
        %297 = vperm.xlu0 %296, %v251
        %v298 = vpop.permute.xlu0 %297
        %301 = vset.pattern.permute.xlu0 0
        %302 = vperm.xlu0 %301, %v252
        %v303 = vpop.permute.xlu0 %302
        %vm305 = vcmask 523264
        %v307 = vsel %vm305, %v245, 0
        %v310 = vsel %vm305, %v246, 0
        %v313 = vsel %vm305, %v247, 0
        %v316 = vsel %vm305, %v248, 0
        %318 = vmatpush.msra.mxu0 0.0
        %319 = vmatpush.msra.mxu0 0.0
        %320 = vmatpush.msra.mxu0 0.0
        %321 = vmatpush.msra.mxu0 0.0
        %322 = vmatpush.msra.mxu0 0.0
        %323 = vmatpush.msra.mxu0 0.0
        %324 = vmatpush.msra.mxu0 0.0
        %325 = vmatpush.msra.mxu0 0.0
        %326 = vmatpush.msra.mxu0 %v283
        %327 = vmatpush.msra.mxu0 %v281
        %328 = vmatpush.msra.mxu0 %v279
        %329 = vmatpush.msra.mxu0 %v277
        %330 = vmatpush.msra.mxu0 %v275
        %331 = vmatpush.msra.mxu0 %v273
        %332 = vmatpush.msra.mxu0 %v271
        %333 = vmatpush.msra.mxu0 %v269
        %334 = vmatmul.f32.gmra.mxu0 %v307
        %v335 = vpop.f32.mrf.mxu0
        %v336 = vadd.f32 %v288, %v335
        %337 = vmatmul.f32.gmra.mxu0 %v310
        %v338 = vpop.f32.mrf.mxu0
        %v339 = vadd.f32 %v293, %v338
        %340 = vmatmul.f32.gmra.mxu0 %v313
        %v341 = vpop.f32.mrf.mxu0
        %v342 = vadd.f32 %v298, %v341
        %343 = vmatmul.f32.gmra.mxu0 %v316
        %v344 = vpop.f32.mrf.mxu0
        %v345 = vadd.f32 %v303, %v344
        %346 = vdwg.mxu0
        %347 = vmatpush.msra.mxu0 0.0
        %348 = vmatpush.msra.mxu0 0.0
        %349 = vmatpush.msra.mxu0 0.0
        %350 = vmatpush.msra.mxu0 0.0
        %351 = vmatpush.msra.mxu0 0.0
        %352 = vmatpush.msra.mxu0 0.0
        %353 = vmatpush.msra.mxu0 0.0
        %354 = vmatpush.msra.mxu0 0.0
        %355 = vmatpush.msra.mxu0 %v284
        %356 = vmatpush.msra.mxu0 %v282
        %357 = vmatpush.msra.mxu0 %v280
        %358 = vmatpush.msra.mxu0 %v278
        %359 = vmatpush.msra.mxu0 %v276
        %360 = vmatpush.msra.mxu0 %v274
        %361 = vmatpush.msra.mxu0 %v272
        %362 = vmatpush.msra.mxu0 %v270
        %363 = vmatmul.f32.gmra.mxu0 %v307
        %v364 = vpop.f32.mrf.mxu0
        %v365 = vadd.f32 %v288, %v364
        %366 = vmatmul.f32.gmra.mxu0 %v310
        %v367 = vpop.f32.mrf.mxu0
        %v368 = vadd.f32 %v293, %v367
        %369 = vmatmul.f32.gmra.mxu0 %v313
        %v370 = vpop.f32.mrf.mxu0
        %v371 = vadd.f32 %v298, %v370
        %372 = vmatmul.f32.gmra.mxu0 %v316
        %v373 = vpop.f32.mrf.mxu0
        %v374 = vadd.f32 %v303, %v373
        %375 = vdwg.mxu0
        %v376 = vmax.f32 %v336, %v365
        %377 = vmax.xlane.f32.xlu0 %v376
        %v378 = vpop.xlane.xlu0 %377
        %v379 = vmax.f32 %v339, %v368
        %380 = vmax.xlane.f32.xlu0 %v379
        %v381 = vpop.xlane.xlu0 %380
        %v382 = vmax.f32 %v342, %v371
        %383 = vmax.xlane.f32.xlu0 %v382
        %v384 = vpop.xlane.xlu0 %383
        %v385 = vmax.f32 %v345, %v374
        %386 = vmax.xlane.f32.xlu0 %v385
        %v387 = vpop.xlane.xlu0 %386
        %v388 = vsub.f32 %v336, %v378
        %v389 = vsub.f32 %v365, %v378
        %v390 = vsub.f32 %v339, %v381
        %v391 = vsub.f32 %v368, %v381
        %v392 = vsub.f32 %v342, %v384
        %v393 = vsub.f32 %v371, %v384
        %v394 = vsub.f32 %v345, %v387
        %v395 = vsub.f32 %v374, %v387
        %v396 = vmul.f32 %v388, 1.442695
        %v397 = vpow.pop %v396
        %v398 = vmul.f32 %v389, 1.442695
        %v399 = vpow.pop %v398
        %v400 = vmul.f32 %v390, 1.442695
        %v401 = vpow.pop %v400
        %v402 = vmul.f32 %v391, 1.442695
        %v403 = vpow.pop %v402
        %v404 = vmul.f32 %v392, 1.442695
        %v405 = vpow.pop %v404
        %v406 = vmul.f32 %v393, 1.442695
        %v407 = vpow.pop %v406
        %v408 = vmul.f32 %v394, 1.442695
        %v409 = vpow.pop %v408
        %v410 = vmul.f32 %v395, 1.442695
        %v411 = vpow.pop %v410
        %v412 = vadd.f32 %v397, %v399
        %413 = vadd.xlane.f32.xlu0 %v412
        %v414 = vpop.xlane.xlu0 %413
        %v415 = vadd.f32 %v401, %v403
        %416 = vadd.xlane.f32.xlu0 %v415
        %v417 = vpop.xlane.xlu0 %416
        %v418 = vadd.f32 %v405, %v407
        %419 = vadd.xlane.f32.xlu0 %v418
        %v420 = vpop.xlane.xlu0 %419
        %v421 = vadd.f32 %v409, %v411
        %422 = vadd.xlane.f32.xlu0 %v421
        %v423 = vpop.xlane.xlu0 %422
        %v424 = vrcp.pop %v414
        %v425 = vrcp.pop %v417
        %v426 = vrcp.pop %v420
        %v427 = vrcp.pop %v423
        %v428 = vmul.f32 %v397, %v424
        %v429 = vmul.f32 %v399, %v424
        %v430 = vmul.f32 %v401, %v425
        %v431 = vmul.f32 %v403, %v425
        %v432 = vmul.f32 %v405, %v426
        %v433 = vmul.f32 %v407, %v426
        %v434 = vmul.f32 %v409, %v427
        %v435 = vmul.f32 %v411, %v427
        %v436 = vadd.f32 %v428, %v430
        %v437 = vadd.f32 %v436, %v432
        %v438 = vadd.f32 %v437, %v434
        %v439 = vrot.slane %v438, 4
        %v440 = vadd.f32 %v438, %v439
        %v441 = vrot.slane %v440, 2
        %v442 = vadd.f32 %v440, %v441
        %v443 = vrot.slane %v442, 1
        %v444 = vadd.f32 %v442, %v443
        %v445 = vadd.f32 %v429, %v431
        %v446 = vadd.f32 %v445, %v433
        %v447 = vadd.f32 %v446, %v435
        %v448 = vrot.slane %v447, 4
        %v449 = vadd.f32 %v447, %v448
        %v450 = vrot.slane %v449, 2
        %v451 = vadd.f32 %v449, %v450
        %v452 = vrot.slane %v451, 1
        %v453 = vadd.f32 %v451, %v452
        %v454 = vadd.f32 %v444, 1e-09
        %v455 = vadd.f32 %v453, 1e-09
        %v456 = vrcp.pop %v454
        %v457 = vmul.f32 %v454, %v456
        %v458 = vsub.f32 1.0, %v457
        %v459 = vmul.f32 %v456, %v458
        %v460 = vadd.f32 %v456, %v459
        %vm461 = vweird.f32 %v454
        %vm462 = vweird.f32 %v456
        %vm463 = vmor %vm461, %vm462
        %v464 = vsel %vm463, %v456, %v460
        %v465 = vand.u32 2147483647, %v454
        %vm466 = vcmp.eq.f32.partialorder %v465, 8.507059e+37
        %v467 = vand.u32 %v454, 2147483648
        %v468 = vor.u32 1.1754944e-38, %v467
        %v469 = vsel %vm466, %v468, %v464
        %v470 = vmul.f32 %v428, %v469
        %v471 = vrcp.pop %v455
        %v472 = vmul.f32 %v455, %v471
        %v473 = vsub.f32 1.0, %v472
        %v474 = vmul.f32 %v471, %v473
        %v475 = vadd.f32 %v471, %v474
        %vm476 = vweird.f32 %v455
        %vm477 = vweird.f32 %v471
        %vm478 = vmor %vm476, %vm477
        %v479 = vsel %vm478, %v471, %v475
        %v480 = vand.u32 2147483647, %v455
        %vm481 = vcmp.eq.f32.partialorder %v480, 8.507059e+37
        %v482 = vand.u32 %v455, 2147483648
        %v483 = vor.u32 1.1754944e-38, %v482
        %v484 = vsel %vm481, %v483, %v479
        %v485 = vmul.f32 %v429, %v484
        %v486 = vmul.f32 %v430, %v469
        %v487 = vmul.f32 %v431, %v484
        %v488 = vmul.f32 %v432, %v469
        %v489 = vmul.f32 %v433, %v484
        %v490 = vmul.f32 %v434, %v469
        %v491 = vmul.f32 %v435, %v484
        %493 = vset.pattern.permute.xlu0 0
        %494 = vperm.xlu0 %493, %v261
        %v495 = vpop.permute.xlu0 %494
        %498 = vset.pattern.permute.xlu0 0
        %499 = vperm.xlu0 %498, %v262
        %v500 = vpop.permute.xlu0 %499
        %503 = vset.pattern.permute.xlu0 0
        %504 = vperm.xlu0 %503, %v263
        %v505 = vpop.permute.xlu0 %504
        %508 = vset.pattern.permute.xlu0 0
        %509 = vperm.xlu0 %508, %v264
        %v510 = vpop.permute.xlu0 %509
        %513 = vset.pattern.permute.xlu0 0
        %514 = vperm.xlu0 %513, %v265
        %v515 = vpop.permute.xlu0 %514
        %518 = vset.pattern.permute.xlu0 0
        %519 = vperm.xlu0 %518, %v266
        %v520 = vpop.permute.xlu0 %519
        %523 = vset.pattern.permute.xlu0 0
        %524 = vperm.xlu0 %523, %v267
        %v525 = vpop.permute.xlu0 %524
        %528 = vset.pattern.permute.xlu0 0
        %529 = vperm.xlu0 %528, %v268
        %v530 = vpop.permute.xlu0 %529
        %vm532 = vcmask 261120
        %v534 = vsel %vm532, %v253, 0
        %v537 = vsel %vm532, %v254, 0
        %v540 = vsel %vm532, %v255, 0
        %v543 = vsel %vm532, %v256, 0
        %v546 = vsel %vm532, %v257, 0
        %v549 = vsel %vm532, %v258, 0
        %v552 = vsel %vm532, %v259, 0
        %v555 = vsel %vm532, %v260, 0
        %557 = vmatpush.msra.mxu0 0.0
        %558 = vmatpush.msra.mxu0 0.0
        %559 = vmatpush.msra.mxu0 0.0
        %560 = vmatpush.msra.mxu0 0.0
        %561 = vmatpush.msra.mxu0 0.0
        %562 = vmatpush.msra.mxu0 0.0
        %563 = vmatpush.msra.mxu0 0.0
        %564 = vmatpush.msra.mxu0 0.0
        %565 = vmatpush.msra.mxu0 0.0
        %566 = vmatpush.msra.mxu0 0.0
        %567 = vmatpush.msra.mxu0 0.0
        %568 = vmatpush.msra.mxu0 0.0
        %569 = vmatpush.msra.mxu0 %v490
        %570 = vmatpush.msra.mxu0 %v488
        %571 = vmatpush.msra.mxu0 %v486
        %572 = vmatpush.msra.mxu0 %v470
        %573 = vmatmul.f32.gmra.mxu0 %v534
        %v574 = vpop.f32.mrf.mxu0
        %v575 = vadd.f32 %v495, %v574
        %576 = vmatmul.f32.gmra.mxu0 %v537
        %v577 = vpop.f32.mrf.mxu0
        %v578 = vadd.f32 %v500, %v577
        %579 = vmatmul.f32.gmra.mxu0 %v540
        %v580 = vpop.f32.mrf.mxu0
        %v581 = vadd.f32 %v505, %v580
        %582 = vmatmul.f32.gmra.mxu0 %v543
        %v583 = vpop.f32.mrf.mxu0
        %v584 = vadd.f32 %v510, %v583
        %585 = vmatmul.f32.gmra.mxu0 %v546
        %v586 = vpop.f32.mrf.mxu0
        %v587 = vadd.f32 %v515, %v586
        %588 = vmatmul.f32.gmra.mxu0 %v549
        %v589 = vpop.f32.mrf.mxu0
        %v590 = vadd.f32 %v520, %v589
        %591 = vmatmul.f32.gmra.mxu0 %v552
        %v592 = vpop.f32.mrf.mxu0
        %v593 = vadd.f32 %v525, %v592
        %594 = vmatmul.f32.gmra.mxu0 %v555
        %v595 = vpop.f32.mrf.mxu0
        %v596 = vadd.f32 %v530, %v595
        %597 = vdwg.mxu0
        %598 = vmatpush.msra.mxu0 0.0
        %599 = vmatpush.msra.mxu0 0.0
        %600 = vmatpush.msra.mxu0 0.0
        %601 = vmatpush.msra.mxu0 0.0
        %602 = vmatpush.msra.mxu0 0.0
        %603 = vmatpush.msra.mxu0 0.0
        %604 = vmatpush.msra.mxu0 0.0
        %605 = vmatpush.msra.mxu0 0.0
        %606 = vmatpush.msra.mxu0 0.0
        %607 = vmatpush.msra.mxu0 0.0
        %608 = vmatpush.msra.mxu0 0.0
        %609 = vmatpush.msra.mxu0 0.0
        %610 = vmatpush.msra.mxu0 %v491
        %611 = vmatpush.msra.mxu0 %v489
        %612 = vmatpush.msra.mxu0 %v487
        %613 = vmatpush.msra.mxu0 %v485
        %614 = vmatmul.f32.gmra.mxu0 %v534
        %v615 = vpop.f32.mrf.mxu0
        %v616 = vadd.f32 %v495, %v615
        %617 = vmatmul.f32.gmra.mxu0 %v537
        %v618 = vpop.f32.mrf.mxu0
        %v619 = vadd.f32 %v500, %v618
        %620 = vmatmul.f32.gmra.mxu0 %v540
        %v621 = vpop.f32.mrf.mxu0
        %v622 = vadd.f32 %v505, %v621
        %623 = vmatmul.f32.gmra.mxu0 %v543
        %v624 = vpop.f32.mrf.mxu0
        %v625 = vadd.f32 %v510, %v624
        %626 = vmatmul.f32.gmra.mxu0 %v546
        %v627 = vpop.f32.mrf.mxu0
        %v628 = vadd.f32 %v515, %v627
        %629 = vmatmul.f32.gmra.mxu0 %v549
        %v630 = vpop.f32.mrf.mxu0
        %v631 = vadd.f32 %v520, %v630
        %632 = vmatmul.f32.gmra.mxu0 %v552
        %v633 = vpop.f32.mrf.mxu0
        %v634 = vadd.f32 %v525, %v633
        %635 = vmatmul.f32.gmra.mxu0 %v555
        %v636 = vpop.f32.mrf.mxu0
        %v637 = vadd.f32 %v530, %v636
        %638 = vdwg.mxu0
        %v639 = vadd.f32 %v575, %v269
        %v640 = vadd.f32 %v616, %v270
        %v641 = vadd.f32 %v578, %v271
        %v642 = vadd.f32 %v619, %v272
        %v643 = vadd.f32 %v581, %v273
        %v644 = vadd.f32 %v622, %v274
        %v645 = vadd.f32 %v584, %v275
        %v646 = vadd.f32 %v625, %v276
        %v647 = vadd.f32 %v587, %v277
        %v648 = vadd.f32 %v628, %v278
        %v649 = vadd.f32 %v590, %v279
        %v650 = vadd.f32 %v631, %v280
        %v651 = vadd.f32 %v593, %v281
        %v652 = vadd.f32 %v634, %v282
        %v653 = vadd.f32 %v596, %v283
        %v654 = vadd.f32 %v637, %v284
        %v655 = vmax.f32 %v639, 0.0
        %v656 = vmax.f32 %v640, 0.0
        %v657 = vmax.f32 %v641, 0.0
        %v658 = vmax.f32 %v642, 0.0
        %v659 = vmax.f32 %v643, 0.0
        %v660 = vmax.f32 %v644, 0.0
        %v661 = vmax.f32 %v645, 0.0
        %v662 = vmax.f32 %v646, 0.0
        %v663 = vmax.f32 %v647, 0.0
        %v664 = vmax.f32 %v648, 0.0
        %v665 = vmax.f32 %v649, 0.0
        %v666 = vmax.f32 %v650, 0.0
        %v667 = vmax.f32 %v651, 0.0
        %v668 = vmax.f32 %v652, 0.0
        %v669 = vmax.f32 %v653, 0.0
        %v670 = vmax.f32 %v654, 0.0
        %671 = vst [vmem:[%s244] sm:$0xff] %v655
        %672 = vst [vmem:[%s244 + $0x8] sm:$0xff] %v656
        %673 = vst [vmem:[%s244 + $0x10] sm:$0xff] %v657
        %674 = vst [vmem:[%s244 + $0x18] sm:$0xff] %v658
        %675 = vst [vmem:[%s244 + $0x20] sm:$0xff] %v659
        %676 = vst [vmem:[%s244 + $0x28] sm:$0xff] %v660
        %677 = vst [vmem:[%s244 + $0x30] sm:$0xff] %v661
        %678 = vst [vmem:[%s244 + $0x38] sm:$0xff] %v662
        %679 = vst [vmem:[%s244 + $0x40] sm:$0xff] %v663
        %680 = vst [vmem:[%s244 + $0x48] sm:$0xff] %v664
        %681 = vst [vmem:[%s244 + $0x50] sm:$0xff] %v665
        %682 = vst [vmem:[%s244 + $0x58] sm:$0xff] %v666
        %683 = vst [vmem:[%s244 + $0x60] sm:$0xff] %v667
        %684 = vst [vmem:[%s244 + $0x68] sm:$0xff] %v668
        %685 = vst [vmem:[%s244 + $0x70] sm:$0xff] %v669
        %686 = vst [vmem:[%s244 + $0x78] sm:$0xff] %v670
        %s687 = sand.u32 %s140, 1
        %s688 = scalar_lea.sflag [#allocation4], %s687
        %s689 = sand.u32 %s140, 1
        %s690 = smul.addr %s689, 128
        %s691 = scalar_lea.vmem [#allocation5], %s690
        // Predicated region
        $region45: #{tpu_custom_call.1} parent=39 // pred_check
          %p692 = pneg %p150
        $region46: #{tpu_custom_call.1} parent=39 // pred_check_branch
          %694 = sbr.rel (%p692) target = $region48
        $region47: #{tpu_custom_call.1} parent=39 // pred_region
          %696 = vsyncadd %s688, 0
          %s697 = smul.addr %s22, 16
          %s698 = smul.addr %s697, 8
          %s699 = scalar_lea.hbm %s5, %s698
          %s700 = sshll.u32 %s691, 4
          %s701 = int_to_ptr.vmem [resolvable:$true] %s700
          %s702 = sshll.u32 %s699, 4
          %s703 = int_to_ptr.hbm [resolvable:$true] %s702
          %708 = dma.vmem_to_hbm [thread:$0]  %s701, 2048, %s703, %s688, 256, 256, 16
        $region48: #{tpu_custom_call.1} parent=39 // pred_fallthru
          _
      $region40: #{tpu_custom_call.1} parent=5 // pred_fallthru
        _
      %p709 = scmp.le.s32.totalorder 2, %s17
      // Predicated region
      $region49: #{tpu_custom_call.1} parent=5 // pred_check
        %p710 = pneg %p709
      $region50: #{tpu_custom_call.1} parent=5 // pred_check_branch
        %712 = sbr.rel (%p710) target = $region52
      $region51: #{tpu_custom_call.1} parent=5 // pred_region
        %s713 = ssub.s32 %s17, 2
        // Predicated region
        $region53: #{tpu_custom_call.1} parent=51 // pred_check
          %p714 = pneg %p156
        $region54: #{tpu_custom_call.1} parent=51 // pred_check_branch
          %716 = sbr.rel (%p714) target = $region56
        $region55: #{tpu_custom_call.1} parent=51 // pred_region
          %s717 = sand.u32 %s141, 1
          %s718 = scalar_lea.sflag [#allocation4], %s717
          %s719 = sand.u32 %s141, 1
          %s720 = smul.addr %s719, 128
          %s721 = scalar_lea.vmem [#allocation5], %s720
          %723 = dma.done %s718, 2048
        $region56: #{tpu_custom_call.1} parent=51 // pred_fallthru
          _
      $region52: #{tpu_custom_call.1} parent=5 // pred_fallthru
        _
    $region6: #{tpu_custom_call.1} parent=1 // loop_footer
      %s21 = sadd.s32 1, %s17
    $region7: #{tpu_custom_call.1} parent=1 // loop_footer_branch
      %16 = sbr.rel target = $region3
    $region8: #{tpu_custom_call.1} parent=1 // loop_exit
      _
    %724 = vsyncpa [#allocation3], 1
    %s725 = scalar_lea.sflag [#allocation3], 1
    %726 = vsyncpa %s725, 1
    %727 = vsyncpa [#allocation4], 1
    %s728 = scalar_lea.sflag [#allocation4], 1
    %729 = vsyncpa %s728, 1

</llo_original>
